<compile_context>
chip_gen: v5e
topology: v5e:2x2
jax: 0.10.0
libtpu: 0.0.40
codegen_flags: <defaults>
</compile_context>

<pallas_src>
import functools

import jax
import jax.numpy as jnp
from jax.experimental import pallas as pl
from jax.experimental.pallas import tpu as pltpu


# --------------------------------------------------------------------------
# Kernel
# --------------------------------------------------------------------------
def _clamp_kernel(x_ref, o_ref, *, lo, hi):
    # One vmax + one vmin per vreg on the VPU; the kernel is purely limited
    # by HBM <-> VMEM DMA bandwidth.
    o_ref[...] = jnp.clip(x_ref[...], lo, hi).astype(o_ref.dtype)


# --------------------------------------------------------------------------
# Wrapper: lane-dense flatten + 1-D row-tiled grid
# --------------------------------------------------------------------------
_LANE_BIG = 1024        # lane width for large inputs (multiple of 128)
_MAX_TILE_ROWS = 512    # 512 * 1024 * 4B = 2 MiB per f32 tile


def clamp_forward(x, min=0.0, max=1.0):
    """Pallas equivalent of Clamp(min, max).forward(x). Works for any shape.

    NOTE: `min`/`max` keyword names mirror the PyTorch module; the Python
    builtins are intentionally never used inside this function.
    """
    lo, hi = float(min), float(max)
    orig_shape = x.shape
    n = x.size

    # Lane-dense layout: last dim is a large multiple of 128.
    lane = _LANE_BIG if n >= _LANE_BIG else 128
    rows = pl.cdiv(n, lane)
    rows = ((rows + 7) // 8) * 8                 # sublane multiple of 8
    # Avoid builtin min() (shadowed by the kwarg above).
    tile_rows = _MAX_TILE_ROWS if rows > _MAX_TILE_ROWS else rows
    grid_rows = pl.cdiv(rows, tile_rows)
    rows_total = grid_rows * tile_rows
    pad = rows_total * lane - n

    flat = x.reshape(-1)
    if pad:
        flat = jnp.pad(flat, (0, pad))
    x2d = flat.reshape(rows_total, lane)

    kernel = functools.partial(_clamp_kernel, lo=lo, hi=hi)
    out2d = pl.pallas_call(
        kernel,
        out_shape=jax.ShapeDtypeStruct((rows_total, lane), x.dtype),
        grid=(grid_rows,),
        in_specs=[pl.BlockSpec((tile_rows, lane), lambda i: (i, 0))],
        out_specs=pl.BlockSpec((tile_rows, lane), lambda i: (i, 0)),
        compiler_params=pltpu.CompilerParams(
            dimension_semantics=("parallel",),      # shard tiles across TCs on v7x
            vmem_limit_bytes=32 * 1024 * 1024,      # headroom: 4 x 2 MiB tiles in flight
        ),
    )(x2d)

    return out2d.reshape(-1)[:n].reshape(orig_shape)


# --------------------------------------------------------------------------
# Main
# --------------------------------------------------------------------------
if __name__ == "__main__":
    key = jax.random.PRNGKey(0)
    x = jax.random.normal(key, (2, 4, 16, 16), dtype=jnp.float32)  # NCHW

    y = clamp_forward(x, min=0.0, max=1.0)
    jax.block_until_ready(y)

    # sanity check against plain-JAX reference
    ref = jnp.clip(x, 0.0, 1.0)
    assert y.shape == x.shape and y.dtype == x.dtype
    assert jnp.array_equal(y, ref)

    # also exercise non-default bounds
    y2 = clamp_forward(x, min=-0.5, max=0.25)
    jax.block_until_ready(y2)
    assert jnp.array_equal(y2, jnp.clip(x, -0.5, 0.25))

    print("KERNEL_OK")
</pallas_src>

<mosaic_0001>
module attributes {stable_mosaic.version = 11 : i64} {
  func.func @_clamp_kernel(%arg0: i32, %arg1: memref<8x1024xf32, #tpu.memory_space<vmem>>, %arg2: memref<8x1024xf32, #tpu.memory_space<vmem>>) attributes {dimension_semantics = [#tpu.dimension_semantics<parallel>], iteration_bounds = array<i64: 1>, scalar_prefetch = 0 : i64, scratch_operands = 0 : i64, tpu.core_type = #tpu.core_type<tc>, window_params = [{transform_indices = @transform_0, window_bounds = array<i64: 8, 1024>}, {transform_indices = @transform_1, window_bounds = array<i64: 8, 1024>}]} {
    %c0 = arith.constant 0 : index
    %c0_0 = arith.constant 0 : index
    %0 = vector.load %arg1[%c0, %c0_0] : memref<8x1024xf32, #tpu.memory_space<vmem>>, vector<8x1024xf32>
    %cst = arith.constant 0.000000e+00 : f32
    %cst_1 = arith.constant 1.000000e+00 : f32
    %1 = vector.broadcast %cst : f32 to vector<8x1024xf32>
    %2 = arith.maximumf %1, %0 : vector<8x1024xf32>
    %3 = vector.broadcast %cst_1 : f32 to vector<8x1024xf32>
    %4 = arith.minimumf %3, %2 : vector<8x1024xf32>
    %c0_2 = arith.constant 0 : index
    %c0_3 = arith.constant 0 : index
    %5 = vector.load %arg2[%c0_2, %c0_3] : memref<8x1024xf32, #tpu.memory_space<vmem>>, vector<8x1024xf32>
    tpu.vector_store %arg2[%c0_2, %c0_3], %4 {strides = array<i32>} : memref<8x1024xf32, #tpu.memory_space<vmem>>, vector<8x1024xf32>,
    return
  }
  func.func @transform_0(%arg0: i32) -> (i32, i32) {
    %c0_i32 = arith.constant 0 : i32
    %c0_i32_0 = arith.constant 0 : i32
    return %arg0, %c0_i32 : i32, i32
  }
  func.func @transform_1(%arg0: i32) -> (i32, i32) {
    %c0_i32 = arith.constant 0 : i32
    %c0_i32_0 = arith.constant 0 : i32
    return %arg0, %c0_i32 : i32, i32
  }
}

</mosaic_0001>

<llo_original>
// kernel: tpu_custom_call.1
$region0: #{tpu_custom_call.1}
  #allocation0 [shape = 'u32[]', space=smem, size = 0x4, offset = 0x4, fixed_abs, tag = 'smem constant byte address 0x4 - core index']
  #allocation1 [shape = 'u32[72,128]{1,0:T(1,128)}', space=vmem, size = 0x9000, scoped, tag = 'internal scratch']
  %s0 = inlined_call_operand.hbm [shape: f32[8,1024], index: 0, kind: input, shape index: {}]
  %s1 = inlined_call_operand.hbm [shape: f32[8,1024], index: 1, kind: output, shape index: {}]
  %s2 = sld [smem:[#allocation0]]
  $region18: #{tpu_custom_call.1} parent=0
    _
  %s4 = ssub.s32 1, %s2
  %s5 = scalar_select 0, %s4, %s2
  $region1: #{tpu_custom_call.1} parent=0
    #allocation2 [shape = 'u8[32768]{0}', space=vmem, size = 0x8000, scoped, tag = 'input window, operand 0, single buffered']
    #allocation3 [shape = 's32[1]{0}', space=sflag, size = 0x4, scoped, tag = 'scoped memory for tpu_custom_call.1']
    #allocation4 [shape = 's32[1]{0}', space=sflag, size = 0x4, scoped, tag = 'scoped memory for tpu_custom_call.1']
    #allocation5 [shape = 'u8[32768]{0}', space=vmem, size = 0x8000, scoped, tag = 'output window, operand 0, single buffered']
    %6 = vsyncpa [#allocation3], 0
    %7 = vsyncpa [#allocation4], 0
    // Predicated region
    $region2: #{tpu_custom_call.1} parent=1 // pred_check
      _
    $region3: #{tpu_custom_call.1} parent=1 // pred_check_branch
      %9 = sbr.rel (0) target = $region5
    $region4: #{tpu_custom_call.1} parent=1 // pred_region
      %11 = vsyncadd [#allocation3], 0
      %s13 = sshll.u32 %s0, 4
      %s14 = int_to_ptr.hbm [resolvable:$true] %s13
      %s15 = sshll.u32 [#allocation2], 4
      %s16 = int_to_ptr.vmem [resolvable:$true] %s15
      %18 = dma.hbm_to_vmem [thread:$0]  %s14, 1024, %s16, [#allocation3]
    $region5: #{tpu_custom_call.1} parent=1 // pred_fallthru
      _
    // Predicated region
    $region6: #{tpu_custom_call.1} parent=1 // pred_check
      _
    $region7: #{tpu_custom_call.1} parent=1 // pred_check_branch
      %20 = sbr.rel (0) target = $region9
    $region8: #{tpu_custom_call.1} parent=1 // pred_region
      %22 = dma.done [#allocation3], 1024
    $region9: #{tpu_custom_call.1} parent=1 // pred_fallthru
      _
    %v23 = vld [vmem:[#allocation2] sm:$0xff]
    %v24 = vld [vmem:[#allocation2 + $0x8] sm:$0xff]
    %v25 = vld [vmem:[#allocation2 + $0x10] sm:$0xff]
    %v26 = vld [vmem:[#allocation2 + $0x18] sm:$0xff]
    %v27 = vld [vmem:[#allocation2 + $0x20] sm:$0xff]
    %v28 = vld [vmem:[#allocation2 + $0x28] sm:$0xff]
    %v29 = vld [vmem:[#allocation2 + $0x30] sm:$0xff]
    %v30 = vld [vmem:[#allocation2 + $0x38] sm:$0xff]
    %v31 = vmax.f32 %v23, 0.0
    %v32 = vmax.f32 %v24, 0.0
    %v33 = vmax.f32 %v25, 0.0
    %v34 = vmax.f32 %v26, 0.0
    %v35 = vmax.f32 %v27, 0.0
    %v36 = vmax.f32 %v28, 0.0
    %v37 = vmax.f32 %v29, 0.0
    %v38 = vmax.f32 %v30, 0.0
    %v39 = vmin.f32 %v31, 1.0
    %v40 = vmin.f32 %v32, 1.0
    %v41 = vmin.f32 %v33, 1.0
    %v42 = vmin.f32 %v34, 1.0
    %v43 = vmin.f32 %v35, 1.0
    %v44 = vmin.f32 %v36, 1.0
    %v45 = vmin.f32 %v37, 1.0
    %v46 = vmin.f32 %v38, 1.0
    %47 = vst [vmem:[#allocation5] sm:$0xff] %v39
    %48 = vst [vmem:[#allocation5 + $0x8] sm:$0xff] %v40
    %49 = vst [vmem:[#allocation5 + $0x10] sm:$0xff] %v41
    %50 = vst [vmem:[#allocation5 + $0x18] sm:$0xff] %v42
    %51 = vst [vmem:[#allocation5 + $0x20] sm:$0xff] %v43
    %52 = vst [vmem:[#allocation5 + $0x28] sm:$0xff] %v44
    %53 = vst [vmem:[#allocation5 + $0x30] sm:$0xff] %v45
    %54 = vst [vmem:[#allocation5 + $0x38] sm:$0xff] %v46
    // Predicated region
    $region10: #{tpu_custom_call.1} parent=1 // pred_check
      _
    $region11: #{tpu_custom_call.1} parent=1 // pred_check_branch
      %56 = sbr.rel (0) target = $region13
    $region12: #{tpu_custom_call.1} parent=1 // pred_region
      %58 = vsyncadd [#allocation4], 0
      %s60 = sshll.u32 [#allocation5], 4
      %s61 = int_to_ptr.vmem [resolvable:$true] %s60
      %s62 = sshll.u32 %s1, 4
      %s63 = int_to_ptr.hbm [resolvable:$true] %s62
      %65 = dma.vmem_to_hbm [thread:$0]  %s61, 1024, %s63, [#allocation4]
    $region13: #{tpu_custom_call.1} parent=1 // pred_fallthru
      _
    // Predicated region
    $region14: #{tpu_custom_call.1} parent=1 // pred_check
      _
    $region15: #{tpu_custom_call.1} parent=1 // pred_check_branch
      %67 = sbr.rel (0) target = $region17
    $region16: #{tpu_custom_call.1} parent=1 // pred_region
      %69 = dma.done [#allocation4], 1024
    $region17: #{tpu_custom_call.1} parent=1 // pred_fallthru
      _
    %70 = vsyncpa [#allocation3], 1
    %71 = vsyncpa [#allocation4], 1

</llo_original>
